<compile_context>
chip_gen: v5e
topology: v5e:2x2
jax: 0.10.0
libtpu: 0.0.40
codegen_flags: <defaults>
</compile_context>

<pallas_src>
import functools

import jax
import jax.numpy as jnp
from jax.experimental import pallas as pl
from jax.experimental.pallas import tpu as pltpu


def _round_up(x, m):
    return ((x + m - 1) // m) * m


def _hw_config():
    """Per-generation tiling / dtype policy.

    v7x: 64 MiB VMEM, 2 TensorCores, bf16 VPU.
    v6e: 128 MiB VMEM, bf16 VPU.
    v5e: 128 MiB VMEM, NO bf16 VPU/EUP -> keep elementwise math f32.
    """
    kind = ""
    try:
        kind = jax.devices()[0].device_kind.lower()
    except Exception:
        pass
    if "v7" in kind:
        return dict(max_tile=8192, vmem_limit=48 * 1024 * 1024, bf16_hidden=True, min_grid=2)
    if "v6" in kind:
        return dict(max_tile=16384, vmem_limit=100 * 1024 * 1024, bf16_hidden=True, min_grid=1)
    if "v5" in kind:
        return dict(max_tile=8192, vmem_limit=100 * 1024 * 1024, bf16_hidden=False, min_grid=1)
    # Unknown generation: conservative caps, f32 elementwise.
    return dict(max_tile=8192, vmem_limit=48 * 1024 * 1024, bf16_hidden=False, min_grid=1)


def _actor_kernel(x_ref, w1_ref, b1_ref, w2_ref, b2_ref, out_ref, *, hidden_dtype):
    # One grid step = one batch tile.  w1/b1/w2/b2 map to block (0, 0) every
    # step, so they are DMA'd once and stay VMEM-resident; only x / out stream.
    x = x_ref[...].astype(jnp.bfloat16)                               # [TB, S]

    # fc1 + bias + ReLU.  Weights are pre-cast to bf16 in the wrapper.
    # On v6e/v7x hidden_dtype == bf16 (bf16 VPU path); on v5e it stays f32.
    h = jnp.dot(x, w1_ref[...], preferred_element_type=hidden_dtype)  # [TB, 512]
    h = jnp.maximum(h + b1_ref[...], 0)
    h = h.astype(jnp.bfloat16)

    # fc2: bf16 operands, f32 accumulate, f32 softmax epilogue (action axis).
    logits = jnp.dot(h, w2_ref[...], preferred_element_type=jnp.float32)
    logits = logits + b2_ref[...]                                     # [TB, A] f32
    m = jnp.max(logits, axis=-1, keepdims=True)
    e = jnp.exp(logits - m)
    denom = jnp.sum(e, axis=-1, keepdims=True)
    # Exact division (not approx reciprocal): rows must sum to 1 at f32
    # precision for downstream TRPO log-prob / KL / ratio math.
    out_ref[...] = (e / denom).astype(out_ref.dtype)


@functools.partial(
    jax.jit, static_argnames=("max_tile", "min_grid", "vmem_limit", "bf16_hidden")
)
def _actor_forward_impl(state, w1, b1, w2, b2, *, max_tile, min_grid, vmem_limit, bf16_hidden):
    batch, state_dim = state.shape
    hidden = w1.shape[1]
    action_dim = w2.shape[1]

    hidden_dtype = jnp.bfloat16 if bf16_hidden else jnp.float32

    # Hoist the weight casts out of the kernel: done once per call instead of
    # once per grid step, and halves the resident weight VMEM / one-time DMA.
    w1c = w1.astype(jnp.bfloat16)
    w2c = w2.astype(jnp.bfloat16)
    b1c = b1.astype(hidden_dtype)
    b2c = b2.astype(jnp.float32)

    # Balanced batch tiles:
    #   * tile cap respects the per-generation VMEM budget,
    #   * min_grid keeps >= 2 grid steps on v7x so both TCs get work,
    #   * padding is bounded by ~8 * n_tiles rows, not a whole tile.
    n_tiles = max(pl.cdiv(batch, max_tile), min(min_grid, max(batch // 8, 1)))
    tb = _round_up(pl.cdiv(batch, n_tiles), 8)
    padded_batch = n_tiles * tb
    if padded_batch != batch:
        state = jnp.pad(state, ((0, padded_batch - batch), (0, 0)))

    kernel = functools.partial(_actor_kernel, hidden_dtype=hidden_dtype)

    out = pl.pallas_call(
        kernel,
        out_shape=jax.ShapeDtypeStruct((padded_batch, action_dim), jnp.float32),
        grid=(n_tiles,),
        in_specs=[
            pl.BlockSpec((tb, state_dim), lambda i: (i, 0)),        # x: streamed per tile
            pl.BlockSpec((state_dim, hidden), lambda i: (0, 0)),    # w1: resident (bf16)
            pl.BlockSpec((1, hidden), lambda i: (0, 0)),            # b1: resident
            pl.BlockSpec((hidden, action_dim), lambda i: (0, 0)),   # w2: resident (bf16)
            pl.BlockSpec((1, action_dim), lambda i: (0, 0)),        # b2: resident
        ],
        out_specs=pl.BlockSpec((tb, action_dim), lambda i: (i, 0)),
        compiler_params=pltpu.CompilerParams(
            dimension_semantics=("parallel",),   # v7x's 2 TCs split the batch grid
            vmem_limit_bytes=vmem_limit,
        ),
    )(state, w1c, b1c, w2c, b2c)

    return out[:batch]


def actor_forward(state, w1, b1, w2, b2):
    cfg = _hw_config()
    return _actor_forward_impl(
        state, w1, b1, w2, b2,
        max_tile=cfg["max_tile"],
        min_grid=cfg["min_grid"],
        vmem_limit=cfg["vmem_limit"],
        bf16_hidden=cfg["bf16_hidden"],
    )


def init_actor_params(key, state_dim, action_dim, hidden=512):
    """Deterministic init mimicking nn.Linear default (uniform +/- 1/sqrt(fan_in))."""
    k1, k2, k3, k4 = jax.random.split(key, 4)
    bound1 = 1.0 / jnp.sqrt(state_dim)
    bound2 = 1.0 / jnp.sqrt(hidden)
    # Stored as [in, out] so the kernel computes x @ W directly.
    w1 = jax.random.uniform(k1, (state_dim, hidden), jnp.float32, -bound1, bound1)
    b1 = jax.random.uniform(k2, (1, hidden), jnp.float32, -bound1, bound1)
    w2 = jax.random.uniform(k3, (hidden, action_dim), jnp.float32, -bound2, bound2)
    b2 = jax.random.uniform(k4, (1, action_dim), jnp.float32, -bound2, bound2)
    return w1, b1, w2, b2


if __name__ == "__main__":
    key = jax.random.PRNGKey(0)
    batch, state_dim, action_dim = 8, 32, 8

    k_state, k_params = jax.random.split(key)
    state = jax.random.normal(k_state, (batch, state_dim), jnp.float32)
    w1, b1, w2, b2 = init_actor_params(k_params, state_dim, action_dim)

    probs = actor_forward(state, w1, b1, w2, b2)
    jax.block_until_ready(probs)

    # Reference in plain JAX f32 (same math as the PyTorch module).
    h_ref = jnp.maximum(state @ w1 + b1, 0.0)
    logits_ref = h_ref @ w2 + b2
    probs_ref = jax.nn.softmax(logits_ref, axis=1)

    assert probs.shape == (batch, action_dim)
    # bf16 MXU operands / bf16 hidden path -> slightly looser than pure f32.
    assert jnp.allclose(probs, probs_ref, atol=5e-3, rtol=5e-2)
    # Exact division in the softmax -> rows sum to 1 at f32 precision.
    assert jnp.allclose(jnp.sum(probs, axis=1), 1.0, atol=1e-4)

    print("KERNEL_OK")
</pallas_src>

<mosaic_0001>
module attributes {stable_mosaic.version = 11 : i64} {
  func.func @_actor_kernel(%arg0: i32, %arg1: memref<8x32xf32, #tpu.memory_space<vmem>>, %arg2: memref<32x512xbf16, #tpu.memory_space<vmem>>, %arg3: memref<1x512xf32, #tpu.memory_space<vmem>>, %arg4: memref<512x8xbf16, #tpu.memory_space<vmem>>, %arg5: memref<1x8xf32, #tpu.memory_space<vmem>>, %arg6: memref<8x8xf32, #tpu.memory_space<vmem>>) attributes {dimension_semantics = [#tpu.dimension_semantics<parallel>], iteration_bounds = array<i64: 1>, scalar_prefetch = 0 : i64, scratch_operands = 0 : i64, tpu.core_type = #tpu.core_type<tc>, window_params = [{transform_indices = @transform_0, window_bounds = array<i64: 8, 32>}, {pipeline_mode = #tpu.pipeline_mode<synchronous>, transform_indices = @transform_1, window_bounds = array<i64: 32, 512>}, {pipeline_mode = #tpu.pipeline_mode<synchronous>, transform_indices = @transform_2, window_bounds = array<i64: 1, 512>}, {pipeline_mode = #tpu.pipeline_mode<synchronous>, transform_indices = @transform_3, window_bounds = array<i64: 512, 8>}, {pipeline_mode = #tpu.pipeline_mode<synchronous>, transform_indices = @transform_4, window_bounds = array<i64: 1, 8>}, {transform_indices = @transform_5, window_bounds = array<i64: 8, 8>}]} {
    %c0 = arith.constant 0 : index
    %c0_0 = arith.constant 0 : index
    %0 = vector.load %arg1[%c0, %c0_0] : memref<8x32xf32, #tpu.memory_space<vmem>>, vector<8x32xf32>
    %1 = arith.truncf %0 : vector<8x32xf32> to vector<8x32xbf16>
    %c0_1 = arith.constant 0 : index
    %c0_2 = arith.constant 0 : index
    %2 = vector.load %arg2[%c0_1, %c0_2] : memref<32x512xbf16, #tpu.memory_space<vmem>>, vector<32x512xbf16>
    %cst = arith.constant dense<0.000000e+00> : vector<8x512xf32>
    %3 = tpu.matmul %1, %2, %cst {dimension_numbers = #tpu.dot_dimension_numbers<[1], [0], [0], [1], [0, 0, 1, 1], [], []>} : vector<8x32xbf16>, vector<32x512xbf16>, vector<8x512xf32> -> vector<8x512xf32>
    %c0_3 = arith.constant 0 : index
    %c0_4 = arith.constant 0 : index
    %4 = vector.load %arg3[%c0_3, %c0_4] : memref<1x512xf32, #tpu.memory_space<vmem>>, vector<1x512xf32>
    %5 = vector.broadcast %4 : vector<1x512xf32> to vector<8x512xf32>
    %6 = arith.addf %3, %5 : vector<8x512xf32>
    %cst_5 = arith.constant 0.000000e+00 : f32
    %7 = vector.broadcast %cst_5 : f32 to vector<8x512xf32>
    %8 = arith.maximumf %6, %7 : vector<8x512xf32>
    %9 = arith.truncf %8 : vector<8x512xf32> to vector<8x512xbf16>
    %c0_6 = arith.constant 0 : index
    %c0_7 = arith.constant 0 : index
    %10 = vector.load %arg4[%c0_6, %c0_7] : memref<512x8xbf16, #tpu.memory_space<vmem>>, vector<512x8xbf16>
    %cst_8 = arith.constant dense<0.000000e+00> : vector<8x8xf32>
    %11 = tpu.matmul %9, %10, %cst_8 {dimension_numbers = #tpu.dot_dimension_numbers<[1], [0], [0], [1], [0, 0, 1, 1], [], []>} : vector<8x512xbf16>, vector<512x8xbf16>, vector<8x8xf32> -> vector<8x8xf32>
    %c0_9 = arith.constant 0 : index
    %c0_10 = arith.constant 0 : index
    %12 = vector.load %arg5[%c0_9, %c0_10] : memref<1x8xf32, #tpu.memory_space<vmem>>, vector<1x8xf32>
    %13 = vector.broadcast %12 : vector<1x8xf32> to vector<8x8xf32>
    %14 = arith.addf %11, %13 : vector<8x8xf32>
    %cst_11 = arith.constant dense<0xFF800000> : vector<8xf32>
    %15 = vector.multi_reduction <maximumf>, %14, %cst_11 [1] : vector<8x8xf32> to vector<8xf32>
    %16 = vector.shape_cast %15 : vector<8xf32> to vector<8x1xf32>
    %17 = vector.broadcast %16 : vector<8x1xf32> to vector<8x8xf32>
    %18 = arith.subf %14, %17 : vector<8x8xf32>
    %19 = math.exp %18 : vector<8x8xf32>
    %cst_12 = arith.constant dense<0.000000e+00> : vector<8xf32>
    %20 = vector.multi_reduction <add>, %19, %cst_12 [1] : vector<8x8xf32> to vector<8xf32>
    %21 = vector.shape_cast %20 : vector<8xf32> to vector<8x1xf32>
    %22 = vector.broadcast %21 : vector<8x1xf32> to vector<8x8xf32>
    %23 = arith.divf %19, %22 : vector<8x8xf32>
    %c0_13 = arith.constant 0 : index
    %c0_14 = arith.constant 0 : index
    %24 = vector.load %arg6[%c0_13, %c0_14] : memref<8x8xf32, #tpu.memory_space<vmem>>, vector<8x8xf32>
    tpu.vector_store %arg6[%c0_13, %c0_14], %23 {strides = array<i32>} : memref<8x8xf32, #tpu.memory_space<vmem>>, vector<8x8xf32>,
    return
  }
  func.func @transform_0(%arg0: i32) -> (i32, i32) {
    %c0_i32 = arith.constant 0 : i32
    %c0_i32_0 = arith.constant 0 : i32
    return %arg0, %c0_i32 : i32, i32
  }
  func.func @transform_1(%arg0: i32) -> (i32, i32) {
    %c0_i32 = arith.constant 0 : i32
    %c0_i32_0 = arith.constant 0 : i32
    %c0_i32_1 = arith.constant 0 : i32
    return %c0_i32, %c0_i32_0 : i32, i32
  }
  func.func @transform_2(%arg0: i32) -> (i32, i32) {
    %c0_i32 = arith.constant 0 : i32
    %c0_i32_0 = arith.constant 0 : i32
    %c0_i32_1 = arith.constant 0 : i32
    return %c0_i32, %c0_i32_0 : i32, i32
  }
  func.func @transform_3(%arg0: i32) -> (i32, i32) {
    %c0_i32 = arith.constant 0 : i32
    %c0_i32_0 = arith.constant 0 : i32
    %c0_i32_1 = arith.constant 0 : i32
    return %c0_i32, %c0_i32_0 : i32, i32
  }
  func.func @transform_4(%arg0: i32) -> (i32, i32) {
    %c0_i32 = arith.constant 0 : i32
    %c0_i32_0 = arith.constant 0 : i32
    %c0_i32_1 = arith.constant 0 : i32
    return %c0_i32, %c0_i32_0 : i32, i32
  }
  func.func @transform_5(%arg0: i32) -> (i32, i32) {
    %c0_i32 = arith.constant 0 : i32
    %c0_i32_0 = arith.constant 0 : i32
    return %arg0, %c0_i32 : i32, i32
  }
}

</mosaic_0001>

<llo_original>
// kernel: _actor_forward_impl.1
$region0: #{_actor_forward_impl.1}
  #allocation0 [shape = 'u32[]', space=smem, size = 0x4, offset = 0x4, fixed_abs, tag = 'smem constant byte address 0x4 - core index']
  #allocation1 [shape = 'u32[72,128]{1,0:T(1,128)}', space=vmem, size = 0x9000, scoped, tag = 'internal scratch']
  %s0 = inlined_call_operand.vmem [shape: f32[8,32], index: 0, kind: input, shape index: {}]
  %s1 = inlined_call_operand.vmem [shape: bf16[32,512], index: 1, kind: input, shape index: {}]
  %s2 = inlined_call_operand.vmem [shape: f32[1,512], index: 2, kind: input, shape index: {}]
  %s3 = inlined_call_operand.vmem [shape: bf16[512,8], index: 3, kind: input, shape index: {}]
  %s4 = inlined_call_operand.vmem [shape: f32[1,8], index: 4, kind: input, shape index: {}]
  %s5 = inlined_call_operand.hbm [shape: f32[8,8], index: 5, kind: output, shape index: {}]
  %s6 = sld [smem:[#allocation0]]
  $region30: #{_actor_forward_impl.1} parent=0
    _
  %s8 = ssub.s32 1, %s6
  %s9 = scalar_select 0, %s8, %s6
  $region1: #{_actor_forward_impl.1} parent=0
    #allocation2 [shape = 'u8[4096]{0}', space=vmem, size = 0x1000, scoped, tag = 'output window, operand 0, single buffered']
    #allocation3 [shape = 's32[1]{0}', space=sflag, size = 0x4, scoped, tag = 'scoped memory for _actor_forward_impl.1']
    %10 = vsyncpa [#allocation3], 0
    // Predicated region
    $region2: #{_actor_forward_impl.1} parent=1 // pred_check
      _
    $region3: #{_actor_forward_impl.1} parent=1 // pred_check_branch
      %12 = sbr.rel (0) target = $region5
    $region4: #{_actor_forward_impl.1} parent=1 // pred_region
      _
    $region5: #{_actor_forward_impl.1} parent=1 // pred_fallthru
      _
    // Predicated region
    $region6: #{_actor_forward_impl.1} parent=1 // pred_check
      _
    $region7: #{_actor_forward_impl.1} parent=1 // pred_check_branch
      %14 = sbr.rel (0) target = $region9
    $region8: #{_actor_forward_impl.1} parent=1 // pred_region
      _
    $region9: #{_actor_forward_impl.1} parent=1 // pred_fallthru
      _
    // Predicated region
    $region10: #{_actor_forward_impl.1} parent=1 // pred_check
      _
    $region11: #{_actor_forward_impl.1} parent=1 // pred_check_branch
      %16 = sbr.rel (0) target = $region13
    $region12: #{_actor_forward_impl.1} parent=1 // pred_region
      _
    $region13: #{_actor_forward_impl.1} parent=1 // pred_fallthru
      _
    // Predicated region
    $region14: #{_actor_forward_impl.1} parent=1 // pred_check
      _
    $region15: #{_actor_forward_impl.1} parent=1 // pred_check_branch
      %18 = sbr.rel (0) target = $region17
    $region16: #{_actor_forward_impl.1} parent=1 // pred_region
      _
    $region17: #{_actor_forward_impl.1} parent=1 // pred_fallthru
      _
    // Predicated region
    $region18: #{_actor_forward_impl.1} parent=1 // pred_check
      _
    $region19: #{_actor_forward_impl.1} parent=1 // pred_check_branch
      %20 = sbr.rel (0) target = $region21
    $region20: #{_actor_forward_impl.1} parent=1 // pred_region
      _
    $region21: #{_actor_forward_impl.1} parent=1 // pred_fallthru
      _
    %v22 = vld [vmem:[%s0] sm:$0xff]
    %v23 = vpack.c.bf16 %v22, %v22
    %v24 = vld [vmem:[%s1] sm:$0xff]
    %v25 = vld [vmem:[%s1 + $0x8] sm:$0xff]
    %v26 = vld [vmem:[%s1 + $0x10] sm:$0xff]
    %v27 = vld [vmem:[%s1 + $0x18] sm:$0xff]
    %v28 = vld [vmem:[%s1 + $0x20] sm:$0xff]
    %v29 = vld [vmem:[%s1 + $0x28] sm:$0xff]
    %v30 = vld [vmem:[%s1 + $0x30] sm:$0xff]
    %v31 = vld [vmem:[%s1 + $0x38] sm:$0xff]
    %v32 = vld [vmem:[%s2] sm:$0xf]
    %v34 = vperm.slane %v32, 0
    %v35 = vperm.slane %v32, 1
    %v36 = vperm.slane %v32, 2
    %v37 = vperm.slane %v32, 3
    %v50 = vunpack.c.l.b16 %v24
    %v51 = vunpack.c.h.b16 %v24
    %v52 = vunpack.c.l.b16 %v25
    %v53 = vunpack.c.h.b16 %v25
    %v54 = vunpack.c.l.b16 %v26
    %v55 = vunpack.c.h.b16 %v26
    %v56 = vunpack.c.l.b16 %v27
    %v57 = vunpack.c.h.b16 %v27
    %v58 = vunpack.c.l.b16 %v28
    %v59 = vunpack.c.h.b16 %v28
    %v60 = vunpack.c.l.b16 %v29
    %v61 = vunpack.c.h.b16 %v29
    %v62 = vunpack.c.l.b16 %v30
    %v63 = vunpack.c.h.b16 %v30
    %v64 = vunpack.c.l.b16 %v31
    %v65 = vunpack.c.h.b16 %v31
    %v66 = vpack.c.b16 %v54, %v50
    %v67 = vpack.c.b16 %v55, %v51
    %v68 = vpack.c.b16 %v56, %v52
    %v69 = vpack.c.b16 %v57, %v53
    %v70 = vpack.c.b16 %v62, %v58
    %v71 = vpack.c.b16 %v63, %v59
    %v72 = vpack.c.b16 %v64, %v60
    %v73 = vpack.c.b16 %v65, %v61
    %vm82 = vcmask 261120
    %v84 = vsel %vm82, %v23, 0
    %86 = vmatpush.bf16.msra.mxu0 0
    %87 = vmatpush.bf16.msra.mxu0 0
    %88 = vmatpush.bf16.msra.mxu0 0
    %89 = vmatpush.bf16.msra.mxu0 0
    %90 = vmatpush.bf16.msra.mxu0 0
    %91 = vmatpush.bf16.msra.mxu0 0
    %92 = vmatpush.bf16.msra.mxu0 %v70
    %93 = vmatpush.bf16.msra.mxu0 %v66
    %94 = vmatmul.bf16.gmra.mxu0 %v84
    %v95 = vpop.f32.mrf.mxu0
    %v96 = vadd.f32 %v34, %v95
    %v97 = vpop.f32.mrf.mxu0
    %98 = vdwg.mxu0
    %99 = vmatpush.bf16.msra.mxu0 0
    %100 = vmatpush.bf16.msra.mxu0 0
    %101 = vmatpush.bf16.msra.mxu0 0
    %102 = vmatpush.bf16.msra.mxu0 0
    %103 = vmatpush.bf16.msra.mxu0 0
    %104 = vmatpush.bf16.msra.mxu0 0
    %105 = vmatpush.bf16.msra.mxu0 %v71
    %106 = vmatpush.bf16.msra.mxu0 %v67
    %107 = vmatmul.bf16.gmra.mxu0 %v84
    %v108 = vpop.f32.mrf.mxu0
    %v109 = vadd.f32 %v35, %v108
    %v110 = vpop.f32.mrf.mxu0
    %111 = vdwg.mxu0
    %112 = vmatpush.bf16.msra.mxu0 0
    %113 = vmatpush.bf16.msra.mxu0 0
    %114 = vmatpush.bf16.msra.mxu0 0
    %115 = vmatpush.bf16.msra.mxu0 0
    %116 = vmatpush.bf16.msra.mxu0 0
    %117 = vmatpush.bf16.msra.mxu0 0
    %118 = vmatpush.bf16.msra.mxu0 %v72
    %119 = vmatpush.bf16.msra.mxu0 %v68
    %120 = vmatmul.bf16.gmra.mxu0 %v84
    %v121 = vpop.f32.mrf.mxu0
    %v122 = vadd.f32 %v36, %v121
    %v123 = vpop.f32.mrf.mxu0
    %124 = vdwg.mxu0
    %125 = vmatpush.bf16.msra.mxu0 0
    %126 = vmatpush.bf16.msra.mxu0 0
    %127 = vmatpush.bf16.msra.mxu0 0
    %128 = vmatpush.bf16.msra.mxu0 0
    %129 = vmatpush.bf16.msra.mxu0 0
    %130 = vmatpush.bf16.msra.mxu0 0
    %131 = vmatpush.bf16.msra.mxu0 %v73
    %132 = vmatpush.bf16.msra.mxu0 %v69
    %133 = vmatmul.bf16.gmra.mxu0 %v84
    %v134 = vpop.f32.mrf.mxu0
    %v135 = vadd.f32 %v37, %v134
    %v136 = vpop.f32.mrf.mxu0
    %137 = vdwg.mxu0
    %v138 = vmax.f32 %v96, 0.0
    %v139 = vmax.f32 %v109, 0.0
    %v140 = vmax.f32 %v122, 0.0
    %v141 = vmax.f32 %v135, 0.0
    %v142 = vpack.c.bf16 %v138, %v138
    %v143 = vpack.c.bf16 %v139, %v139
    %v144 = vpack.c.bf16 %v140, %v140
    %v145 = vpack.c.bf16 %v141, %v141
    %v146 = vld [vmem:[%s3] sm:$0xf]
    %v147 = vld [vmem:[%s3 + $0x4] sm:$0xf]
    %v148 = vld [vmem:[%s3 + $0x8] sm:$0xf]
    %v149 = vld [vmem:[%s3 + $0xc] sm:$0xf]
    %v150 = vld [vmem:[%s3 + $0x10] sm:$0xf]
    %v151 = vld [vmem:[%s3 + $0x14] sm:$0xf]
    %v152 = vld [vmem:[%s3 + $0x18] sm:$0xf]
    %v153 = vld [vmem:[%s3 + $0x1c] sm:$0xf]
    %v154 = vld [vmem:[%s3 + $0x20] sm:$0xf]
    %v155 = vld [vmem:[%s3 + $0x24] sm:$0xf]
    %v156 = vld [vmem:[%s3 + $0x28] sm:$0xf]
    %v157 = vld [vmem:[%s3 + $0x2c] sm:$0xf]
    %v158 = vld [vmem:[%s3 + $0x30] sm:$0xf]
    %v159 = vld [vmem:[%s3 + $0x34] sm:$0xf]
    %v160 = vld [vmem:[%s3 + $0x38] sm:$0xf]
    %v161 = vld [vmem:[%s3 + $0x3c] sm:$0xf]
    %v162 = vld [vmem:[%s3 + $0x40] sm:$0xf]
    %v163 = vld [vmem:[%s3 + $0x44] sm:$0xf]
    %v164 = vld [vmem:[%s3 + $0x48] sm:$0xf]
    %v165 = vld [vmem:[%s3 + $0x4c] sm:$0xf]
    %v166 = vld [vmem:[%s3 + $0x50] sm:$0xf]
    %v167 = vld [vmem:[%s3 + $0x54] sm:$0xf]
    %v168 = vld [vmem:[%s3 + $0x58] sm:$0xf]
    %v169 = vld [vmem:[%s3 + $0x5c] sm:$0xf]
    %v170 = vld [vmem:[%s3 + $0x60] sm:$0xf]
    %v171 = vld [vmem:[%s3 + $0x64] sm:$0xf]
    %v172 = vld [vmem:[%s3 + $0x68] sm:$0xf]
    %v173 = vld [vmem:[%s3 + $0x6c] sm:$0xf]
    %v174 = vld [vmem:[%s3 + $0x70] sm:$0xf]
    %v175 = vld [vmem:[%s3 + $0x74] sm:$0xf]
    %v176 = vld [vmem:[%s3 + $0x78] sm:$0xf]
    %v177 = vld [vmem:[%s3 + $0x7c] sm:$0xf]
    %v178 = vld [vmem:[%s3 + $0x80] sm:$0xf]
    %v179 = vld [vmem:[%s3 + $0x84] sm:$0xf]
    %v180 = vld [vmem:[%s3 + $0x88] sm:$0xf]
    %v181 = vld [vmem:[%s3 + $0x8c] sm:$0xf]
    %v182 = vld [vmem:[%s3 + $0x90] sm:$0xf]
    %v183 = vld [vmem:[%s3 + $0x94] sm:$0xf]
    %v184 = vld [vmem:[%s3 + $0x98] sm:$0xf]
    %v185 = vld [vmem:[%s3 + $0x9c] sm:$0xf]
    %v186 = vld [vmem:[%s3 + $0xa0] sm:$0xf]
    %v187 = vld [vmem:[%s3 + $0xa4] sm:$0xf]
    %v188 = vld [vmem:[%s3 + $0xa8] sm:$0xf]
    %v189 = vld [vmem:[%s3 + $0xac] sm:$0xf]
    %v190 = vld [vmem:[%s3 + $0xb0] sm:$0xf]
    %v191 = vld [vmem:[%s3 + $0xb4] sm:$0xf]
    %v192 = vld [vmem:[%s3 + $0xb8] sm:$0xf]
    %v193 = vld [vmem:[%s3 + $0xbc] sm:$0xf]
    %v194 = vld [vmem:[%s3 + $0xc0] sm:$0xf]
    %v195 = vld [vmem:[%s3 + $0xc4] sm:$0xf]
    %v196 = vld [vmem:[%s3 + $0xc8] sm:$0xf]
    %v197 = vld [vmem:[%s3 + $0xcc] sm:$0xf]
    %v198 = vld [vmem:[%s3 + $0xd0] sm:$0xf]
    %v199 = vld [vmem:[%s3 + $0xd4] sm:$0xf]
    %v200 = vld [vmem:[%s3 + $0xd8] sm:$0xf]
    %v201 = vld [vmem:[%s3 + $0xdc] sm:$0xf]
    %v202 = vld [vmem:[%s3 + $0xe0] sm:$0xf]
    %v203 = vld [vmem:[%s3 + $0xe4] sm:$0xf]
    %v204 = vld [vmem:[%s3 + $0xe8] sm:$0xf]
    %v205 = vld [vmem:[%s3 + $0xec] sm:$0xf]
    %v206 = vld [vmem:[%s3 + $0xf0] sm:$0xf]
    %v207 = vld [vmem:[%s3 + $0xf4] sm:$0xf]
    %v208 = vld [vmem:[%s3 + $0xf8] sm:$0xf]
    %v209 = vld [vmem:[%s3 + $0xfc] sm:$0xf]
    %v210 = vld [vmem:[%s4] sm:$0x1]
    %v212 = vperm.slane %v210, 0
    %v278 = vunpack.c.l.b16 %v146
    %v279 = vunpack.c.l.b16 %v147
    %v280 = vunpack.c.l.b16 %v148
    %v281 = vunpack.c.l.b16 %v149
    %v282 = vunpack.c.l.b16 %v150
    %v283 = vunpack.c.l.b16 %v151
    %v284 = vunpack.c.l.b16 %v152
    %v285 = vunpack.c.l.b16 %v153
    %v286 = vunpack.c.l.b16 %v154
    %v287 = vunpack.c.l.b16 %v155
    %v288 = vunpack.c.l.b16 %v156
    %v289 = vunpack.c.l.b16 %v157
    %v290 = vunpack.c.l.b16 %v158
    %v291 = vunpack.c.l.b16 %v159
    %v292 = vunpack.c.l.b16 %v160
    %v293 = vunpack.c.l.b16 %v161
    %v294 = vunpack.c.l.b16 %v162
    %v295 = vunpack.c.l.b16 %v163
    %v296 = vunpack.c.l.b16 %v164
    %v297 = vunpack.c.l.b16 %v165
    %v298 = vunpack.c.l.b16 %v166
    %v299 = vunpack.c.l.b16 %v167
    %v300 = vunpack.c.l.b16 %v168
    %v301 = vunpack.c.l.b16 %v169
    %v302 = vunpack.c.l.b16 %v170
    %v303 = vunpack.c.l.b16 %v171
    %v304 = vunpack.c.l.b16 %v172
    %v305 = vunpack.c.l.b16 %v173
    %v306 = vunpack.c.l.b16 %v174
    %v307 = vunpack.c.l.b16 %v175
    %v308 = vunpack.c.l.b16 %v176
    %v309 = vunpack.c.l.b16 %v177
    %v310 = vunpack.c.l.b16 %v178
    %v311 = vunpack.c.l.b16 %v179
    %v312 = vunpack.c.l.b16 %v180
    %v313 = vunpack.c.l.b16 %v181
    %v314 = vunpack.c.l.b16 %v182
    %v315 = vunpack.c.l.b16 %v183
    %v316 = vunpack.c.l.b16 %v184
    %v317 = vunpack.c.l.b16 %v185
    %v318 = vunpack.c.l.b16 %v186
    %v319 = vunpack.c.l.b16 %v187
    %v320 = vunpack.c.l.b16 %v188
    %v321 = vunpack.c.l.b16 %v189
    %v322 = vunpack.c.l.b16 %v190
    %v323 = vunpack.c.l.b16 %v191
    %v324 = vunpack.c.l.b16 %v192
    %v325 = vunpack.c.l.b16 %v193
    %v326 = vunpack.c.l.b16 %v194
    %v327 = vunpack.c.l.b16 %v195
    %v328 = vunpack.c.l.b16 %v196
    %v329 = vunpack.c.l.b16 %v197
    %v330 = vunpack.c.l.b16 %v198
    %v331 = vunpack.c.l.b16 %v199
    %v332 = vunpack.c.l.b16 %v200
    %v333 = vunpack.c.l.b16 %v201
    %v334 = vunpack.c.l.b16 %v202
    %v335 = vunpack.c.l.b16 %v203
    %v336 = vunpack.c.l.b16 %v204
    %v337 = vunpack.c.l.b16 %v205
    %v338 = vunpack.c.l.b16 %v206
    %v339 = vunpack.c.l.b16 %v207
    %v340 = vunpack.c.l.b16 %v208
    %v341 = vunpack.c.l.b16 %v209
    %v342 = vpack.c.b16 %v279, %v278
    %v343 = vpack.c.b16 %v281, %v280
    %v344 = vpack.c.b16 %v283, %v282
    %v345 = vpack.c.b16 %v285, %v284
    %v346 = vpack.c.b16 %v287, %v286
    %v347 = vpack.c.b16 %v289, %v288
    %v348 = vpack.c.b16 %v291, %v290
    %v349 = vpack.c.b16 %v293, %v292
    %v350 = vpack.c.b16 %v295, %v294
    %v351 = vpack.c.b16 %v297, %v296
    %v352 = vpack.c.b16 %v299, %v298
    %v353 = vpack.c.b16 %v301, %v300
    %v354 = vpack.c.b16 %v303, %v302
    %v355 = vpack.c.b16 %v305, %v304
    %v356 = vpack.c.b16 %v307, %v306
    %v357 = vpack.c.b16 %v309, %v308
    %v358 = vpack.c.b16 %v311, %v310
    %v359 = vpack.c.b16 %v313, %v312
    %v360 = vpack.c.b16 %v315, %v314
    %v361 = vpack.c.b16 %v317, %v316
    %v362 = vpack.c.b16 %v319, %v318
    %v363 = vpack.c.b16 %v321, %v320
    %v364 = vpack.c.b16 %v323, %v322
    %v365 = vpack.c.b16 %v325, %v324
    %v366 = vpack.c.b16 %v327, %v326
    %v367 = vpack.c.b16 %v329, %v328
    %v368 = vpack.c.b16 %v331, %v330
    %v369 = vpack.c.b16 %v333, %v332
    %v370 = vpack.c.b16 %v335, %v334
    %v371 = vpack.c.b16 %v337, %v336
    %v372 = vpack.c.b16 %v339, %v338
    %v373 = vpack.c.b16 %v341, %v340
    %406 = vmatpush.bf16.msra.mxu0 %v349
    %407 = vmatpush.bf16.msra.mxu0 %v348
    %408 = vmatpush.bf16.msra.mxu0 %v347
    %409 = vmatpush.bf16.msra.mxu0 %v346
    %410 = vmatpush.bf16.msra.mxu0 %v345
    %411 = vmatpush.bf16.msra.mxu0 %v344
    %412 = vmatpush.bf16.msra.mxu0 %v343
    %413 = vmatpush.bf16.msra.mxu0 %v342
    %414 = vmatmul.bf16.gmra.mxu0 %v142
    %v415 = vpop.f32.mrf.mxu0
    %v416 = vadd.f32 %v212, %v415
    %v417 = vpop.f32.mrf.mxu0
    %418 = vdwg.mxu0
    %419 = vmatpush.bf16.msra.mxu0 %v357
    %420 = vmatpush.bf16.msra.mxu0 %v356
    %421 = vmatpush.bf16.msra.mxu0 %v355
    %422 = vmatpush.bf16.msra.mxu0 %v354
    %423 = vmatpush.bf16.msra.mxu0 %v353
    %424 = vmatpush.bf16.msra.mxu0 %v352
    %425 = vmatpush.bf16.msra.mxu0 %v351
    %426 = vmatpush.bf16.msra.mxu0 %v350
    %427 = vmatmul.bf16.gmra.mxu0 %v143
    %v428 = vpop.f32.mrf.mxu0
    %v429 = vadd.f32 %v416, %v428
    %v430 = vpop.f32.mrf.mxu0
    %431 = vdwg.mxu0
    %432 = vmatpush.bf16.msra.mxu0 %v365
    %433 = vmatpush.bf16.msra.mxu0 %v364
    %434 = vmatpush.bf16.msra.mxu0 %v363
    %435 = vmatpush.bf16.msra.mxu0 %v362
    %436 = vmatpush.bf16.msra.mxu0 %v361
    %437 = vmatpush.bf16.msra.mxu0 %v360
    %438 = vmatpush.bf16.msra.mxu0 %v359
    %439 = vmatpush.bf16.msra.mxu0 %v358
    %440 = vmatmul.bf16.gmra.mxu0 %v144
    %v441 = vpop.f32.mrf.mxu0
    %v442 = vadd.f32 %v429, %v441
    %v443 = vpop.f32.mrf.mxu0
    %444 = vdwg.mxu0
    %445 = vmatpush.bf16.msra.mxu0 %v373
    %446 = vmatpush.bf16.msra.mxu0 %v372
    %447 = vmatpush.bf16.msra.mxu0 %v371
    %448 = vmatpush.bf16.msra.mxu0 %v370
    %449 = vmatpush.bf16.msra.mxu0 %v369
    %450 = vmatpush.bf16.msra.mxu0 %v368
    %451 = vmatpush.bf16.msra.mxu0 %v367
    %452 = vmatpush.bf16.msra.mxu0 %v366
    %453 = vmatmul.bf16.gmra.mxu0 %v145
    %v454 = vpop.f32.mrf.mxu0
    %v455 = vadd.f32 %v442, %v454
    %v456 = vpop.f32.mrf.mxu0
    %457 = vdwg.mxu0
    %vm458 = vcmask 64512
    %v459 = vsel %vm458, %v455, -inf
    %460 = vmax.xlane.f32.xlu0 %v459
    %v461 = vpop.xlane.xlu0 %460
    %v462 = vsub.f32 %v455, %v461
    %v463 = vmul.f32 %v462, 1.442695
    %v464 = vpow.pop %v463
    %v465 = vsel %vm458, %v464, 0.0
    %466 = vadd.xlane.f32.xlu0 %v465
    %v467 = vpop.xlane.xlu0 %466
    %v468 = vrcp.pop %v467
    %v469 = vmul.f32 %v467, %v468
    %v470 = vsub.f32 1.0, %v469
    %v471 = vmul.f32 %v468, %v470
    %v472 = vadd.f32 %v468, %v471
    %vm473 = vweird.f32 %v467
    %vm474 = vweird.f32 %v468
    %vm475 = vmor %vm473, %vm474
    %v476 = vsel %vm475, %v468, %v472
    %v477 = vand.u32 2147483647, %v467
    %vm478 = vcmp.eq.f32.partialorder %v477, 8.507059e+37
    %v479 = vand.u32 %v467, 2147483648
    %v480 = vor.u32 1.1754944e-38, %v479
    %v481 = vsel %vm478, %v480, %v476
    %v482 = vmul.f32 %v464, %v481
    %483 = vst.msk [vmem:[#allocation2] sm:$0xff] %vm458, %v482
    // Predicated region
    $region22: #{_actor_forward_impl.1} parent=1 // pred_check
      _
    $region23: #{_actor_forward_impl.1} parent=1 // pred_check_branch
      %485 = sbr.rel (0) target = $region25
    $region24: #{_actor_forward_impl.1} parent=1 // pred_region
      %487 = vsyncadd [#allocation3], 0
      %s489 = sshll.u32 [#allocation2], 4
      %s490 = int_to_ptr.vmem [resolvable:$true] %s489
      %s491 = sshll.u32 %s5, 4
      %s492 = int_to_ptr.hbm [resolvable:$true] %s491
      %494 = dma.vmem_to_hbm [thread:$0]  %s490, 128, %s492, [#allocation3]
    $region25: #{_actor_forward_impl.1} parent=1 // pred_fallthru
      _
    // Predicated region
    $region26: #{_actor_forward_impl.1} parent=1 // pred_check
      _
    $region27: #{_actor_forward_impl.1} parent=1 // pred_check_branch
      %496 = sbr.rel (0) target = $region29
    $region28: #{_actor_forward_impl.1} parent=1 // pred_region
      %498 = dma.done [#allocation3], 128
    $region29: #{_actor_forward_impl.1} parent=1 // pred_fallthru
      _
    %499 = vsyncpa [#allocation3], 1

</llo_original>
